<compile_context>
chip_gen: v7x
topology: tpu7x:2x2x1
jax: 0.10.0
libtpu: 0.0.40
codegen_flags: <defaults>
</compile_context>

<pallas_src>
import functools

import numpy as np
import jax
import jax.numpy as jnp
from jax.experimental import pallas as pl
from jax.experimental.pallas import tpu as pltpu


# ----------------------------------------------------------------------------
# Host-side glue: faithful NumPy port of sample_cosistent_neibors
# ----------------------------------------------------------------------------
def sample_consistent_neighbors_np(nodes, center_scores, neigh_scores,
                                   neigh_pos_scores, neighs_list, sample_list):
    samp_neighs = []
    for idx in range(len(nodes)):
        nodeid = nodes[idx]
        center_score = center_scores[idx]
        neigh_score = np.asarray(neigh_scores[idx])
        neighs_indices = neighs_list[idx]
        num_sample = sample_list[idx]
        neigh_pos_score = np.asarray(neigh_pos_scores[idx])
        diff = np.abs(neigh_pos_score - center_score)
        sorted_indices1 = np.argsort(-neigh_score, kind="stable")   # descending
        sorted_indices2 = np.argsort(diff, kind="stable")           # ascending
        if len(neigh_score) > num_sample + 1:
            selected = [neighs_indices[n] for n in sorted_indices1[:num_sample + 1]]
            selected.extend(neighs_indices[n] for n in sorted_indices2[:num_sample + 1])
        else:
            selected = list(neighs_indices)
        selected = set(selected)
        if len(selected) > 1:
            selected.discard(nodeid)
        samp_neighs.append(selected)
    return samp_neighs


def build_mask_and_unique(samp_neighs):
    """Returns exact 0/1 mask, per-row 1/num_neigh, and the unique-node list."""
    unique_nodes_list = list(set.union(*samp_neighs))
    unique_nodes = {n: i for i, n in enumerate(unique_nodes_list)}
    mask01 = np.zeros((len(samp_neighs), len(unique_nodes)), dtype=np.float32)
    for i, samp_neigh in enumerate(samp_neighs):
        for n in samp_neigh:
            mask01[i, unique_nodes[n]] = 1.0
    num_neigh = mask01.sum(axis=1, keepdims=True)
    inv_deg = (1.0 / num_neigh).astype(np.float32)
    return mask01, inv_deg, unique_nodes_list


# ----------------------------------------------------------------------------
# Pallas kernel: 4 small MXU dots, no VMEM scratch, single lane-dense store
#   s1    = x @ [simTrans | w_self | 0]           (bf16 x bf16 -> f32, K=F)
#   sim   = relu(s1[:, :C])
#   neigh = (mask01 @ embed) * inv_deg             (bf16 x bf16 -> f32, f32 scale)
#   s2    = neigh_bf16 @ [0|w_neigh|0] + sim_bf16 @ [0|w_sim|0]
#   slab  = relu(s1 + s2)   -> cols [0:C)=sim, [C:C+E)=out, rest 0
# ----------------------------------------------------------------------------
def intra_agg_kernel(x_ref, mask_ref, embed_ref, inv_deg_ref,
                     w1_ref, w2n_ref, w2s_ref, out_ref, *, C):
    x = x_ref[...]                                              # [Bp, F]  bf16
    # Stage 1: one MXU call over the fused RHS (K=F, N=Pout).
    s1 = jnp.dot(x, w1_ref[...], preferred_element_type=jnp.float32)   # [Bp, Pout] f32
    sim = jnp.maximum(s1[:, :C], 0.0)                           # relu(x @ simTrans)

    # Neighbor mean: exact 0/1 bf16 mask @ bf16 embed (f32 accum), f32 post-scale.
    neigh = jnp.dot(mask_ref[...], embed_ref[...],
                    preferred_element_type=jnp.float32)          # [Bp, F] f32
    neigh = neigh * inv_deg_ref[...]                             # broadcast [Bp,1]

    # Stage 2: two small dots, summed in vregs (no scratch concat).
    s2 = jnp.dot(neigh.astype(jnp.bfloat16), w2n_ref[...],
                 preferred_element_type=jnp.float32)             # [Bp, Pout]
    s2 = s2 + jnp.dot(sim.astype(jnp.bfloat16), w2s_ref[...],
                      preferred_element_type=jnp.float32)

    # Single lane-dense (128-wide) unmasked store; zero W2 columns keep sim intact.
    out_ref[...] = jnp.maximum(s1 + s2, 0.0)


def _round_up(x, m):
    return ((x + m - 1) // m) * m


def _pad_to(a, shape):
    pads = [(0, s - d) for d, s in zip(a.shape, shape)]
    return jnp.pad(a, pads)


# ----------------------------------------------------------------------------
# One-time parameter preparation (hoisted out of the per-call path)
# ----------------------------------------------------------------------------
def prepare_intra_agg_params(simTrans, weight):
    """Build fused bf16 RHS blocks once per (simTrans, weight)."""
    F, C = simTrans.shape
    K, E = weight.shape
    assert K == 2 * F + C
    Pout = _round_up(C + E, 128)            # lane-dense fused output slab width

    w_self = weight[:F]
    w_neigh = weight[F:2 * F]
    w_sim = weight[2 * F:]

    # Stage-1 RHS: [simTrans | w_self | 0pad]             (F, Pout)
    W1 = jnp.zeros((F, Pout), jnp.float32)
    W1 = W1.at[:, :C].set(simTrans).at[:, C:C + E].set(w_self)
    # Stage-2 RHS halves: [0 | w_neigh | 0]  (F, Pout)  and  [0 | w_sim | 0]  (C, Pout)
    W2n = jnp.zeros((F, Pout), jnp.float32).at[:, C:C + E].set(w_neigh)
    W2s = jnp.zeros((C, Pout), jnp.float32).at[:, C:C + E].set(w_sim)

    W1 = W1.astype(jnp.bfloat16)
    W2n = W2n.astype(jnp.bfloat16)
    W2s = W2s.astype(jnp.bfloat16)

    # Invariant for the lane-dense slab trick: columns [0:C) of W2n/W2s must be zero
    # so slab[:, :C] reproduces sim exactly.  Checked once, here, not per call.
    assert not np.any(np.asarray(W2n[:, :C])) and not np.any(np.asarray(W2s[:, :C]))

    return dict(W1=W1, W2n=W2n, W2s=W2s, F=F, C=C, E=E, Pout=Pout)


# ----------------------------------------------------------------------------
# Jitted forward: pads + casts + pallas_call + output slices in one program
# ----------------------------------------------------------------------------
@functools.partial(jax.jit, static_argnames=("C", "E", "Pout"))
def _intra_agg_forward_jit(self_feats, mask01, inv_deg, embed_matrix,
                           W1, W2n, W2s, *, C, E, Pout):
    B, F = self_feats.shape
    U = mask01.shape[1]

    # Layout plumbing: bucketed, MXU / lane-friendly shapes (bounded recompiles).
    Bp = _round_up(max(B, 1), 16)           # bf16 packs 16 rows per sublane tile
    Up = _round_up(max(U, 1), 128)          # zero rows/cols don't change the mean

    x_p = _pad_to(self_feats, (Bp, F)).astype(jnp.bfloat16)
    m_p = _pad_to(mask01, (Bp, Up)).astype(jnp.bfloat16)        # exact 0/1 in bf16
    e_p = _pad_to(embed_matrix, (Up, F)).astype(jnp.bfloat16)
    d_p = _pad_to(inv_deg, (Bp, 1)).astype(jnp.float32)          # padded rows -> 0

    full = lambda shp: pl.BlockSpec(shp, lambda: (0,) * len(shp))

    flops = int(2 * Bp * (F * Pout + Up * F + F * Pout + C * Pout))
    bytes_accessed = int(2 * (Bp * F + Bp * Up + Up * F
                              + F * Pout + F * Pout + C * Pout)
                         + 4 * (Bp + Bp * Pout))

    # NOTE: shapes here are tiny, so a gridless whole-array call is best.  If B/U
    # grow: grid over Bp ("parallel", uses v7x's 2 TCs) with U as the trailing
    # "arbitrary" reduction axis + VMEM accumulator, and re-budget tiles against
    # v7x's 32 MiB scoped VMEM (set vmem_limit_bytes explicitly).
    slab = pl.pallas_call(
        functools.partial(intra_agg_kernel, C=C),
        out_shape=jax.ShapeDtypeStruct((Bp, Pout), jnp.float32),
        in_specs=[full((Bp, F)), full((Bp, Up)), full((Up, F)), full((Bp, 1)),
                  full((F, Pout)), full((F, Pout)), full((C, Pout))],
        out_specs=full((Bp, Pout)),
        cost_estimate=pl.CostEstimate(flops=flops, transcendentals=0,
                                      bytes_accessed=bytes_accessed),
    )(x_p, m_p, e_p, d_p, W1, W2n, W2s)

    sim = slab[:B, :C]
    out = slab[:B, C:C + E]
    return out, sim


def intra_agg_forward(self_feats, mask01, inv_deg, embed_matrix, params):
    """Fused IntraAgg forward. Returns (to_feats [B,E] f32, sim_matrix [B,C] f32)."""
    return _intra_agg_forward_jit(
        self_feats, mask01, inv_deg, embed_matrix,
        params["W1"], params["W2n"], params["W2s"],
        C=params["C"], E=params["E"], Pout=params["Pout"])


# ----------------------------------------------------------------------------
# References for correctness checks
# ----------------------------------------------------------------------------
def intra_agg_ref_bf16(self_feats, mask01, inv_deg, embed_matrix, simTrans, weight):
    """Quantization-matched reference (mirrors the kernel's bf16 operand casts)."""
    bf = lambda a: a.astype(jnp.bfloat16).astype(jnp.float32)
    F = self_feats.shape[1]
    C = simTrans.shape[1]
    x = bf(self_feats)
    sim = jax.nn.relu(x @ bf(simTrans))
    neigh = (bf(mask01) @ bf(embed_matrix)) * inv_deg
    out = jax.nn.relu(x @ bf(weight[:F])
                      + bf(neigh) @ bf(weight[F:2 * F])
                      + bf(sim) @ bf(weight[2 * F:]))
    return out, sim


def intra_agg_ref_f32(self_feats, mask01, inv_deg, embed_matrix, simTrans, weight):
    """Pure f32 module semantics (loose check, bf16-operand-level tolerance)."""
    hp = jax.lax.Precision.HIGHEST
    sim = jax.nn.relu(jnp.dot(self_feats, simTrans, precision=hp))
    neigh = jnp.dot(mask01 * inv_deg, embed_matrix, precision=hp)
    cat = jnp.concatenate([self_feats, neigh, sim], axis=1)
    return jax.nn.relu(jnp.dot(cat, weight, precision=hp)), sim


# ----------------------------------------------------------------------------
# Parameter init (xavier_uniform, deterministic)
# ----------------------------------------------------------------------------
def xavier_uniform(key, shape):
    fan_in, fan_out = shape
    bound = float(np.sqrt(6.0 / (fan_in + fan_out)))
    return jax.random.uniform(key, shape, jnp.float32, -bound, bound)


if __name__ == "__main__":
    # Small, module-consistent shapes
    N_total = 64     # total nodes in feature table
    F = 32           # feat_dim
    C = 16           # contra_dim
    E = 64           # emb_size
    B = 8            # batch size
    MAX_NEIGH = 10

    key = jax.random.PRNGKey(0)
    k_feat, k_w, k_d, k_s = jax.random.split(key, 4)

    # Feature table ("self.features" lookup)
    features = jax.random.normal(k_feat, (N_total, F), jnp.float32)

    # Module parameters
    weight = xavier_uniform(k_w, (2 * F + C, E))            # nn.Parameter weight
    diff = xavier_uniform(k_d, (E, 1))                      # unused in test-mode forward
    simTrans = jax.random.normal(k_s, (F, C), jnp.float32)  # data_name='amazon' path

    # One-time fused/bf16 parameter preparation (hoisted out of the per-call path)
    params = prepare_intra_agg_params(simTrans, weight)

    # Deterministic batch / neighbor structure (host glue)
    rng = np.random.RandomState(0)
    nodes = list(rng.choice(N_total, size=B, replace=False))
    to_neighs_list = []
    for nid in nodes:
        k = rng.randint(4, MAX_NEIGH + 1)
        neighs = list(rng.choice(N_total, size=k, replace=False))
        if nid not in neighs:
            neighs[0] = nid  # ensure self is present (as original code assumes)
        to_neighs_list.append(neighs)
    sample_list = [rng.randint(1, 4) for _ in range(B)]
    batch_scores = rng.rand(B).astype(np.float32)
    neigh_scores = [rng.rand(len(nl)).astype(np.float32) for nl in to_neighs_list]
    neigh_pos_scores = [rng.rand(len(nl)).astype(np.float32) for nl in to_neighs_list]
    batch_labels = (rng.rand(B) > 0.7).astype(np.float32)

    # Neighbor filtering + 0/1 mask + 1/deg (host glue, no Pallas equivalent)
    samp_neighs = sample_consistent_neighbors_np(
        nodes, batch_scores, neigh_scores, neigh_pos_scores,
        to_neighs_list, sample_list)
    mask01_np, inv_deg_np, unique_nodes_list = build_mask_and_unique(samp_neighs)

    self_feats = features[np.asarray(nodes)]
    embed_matrix = features[np.asarray(unique_nodes_list)]
    mask01 = jnp.asarray(mask01_np)
    inv_deg = jnp.asarray(inv_deg_np)

    # Pallas kernel (test-mode forward, data_name='amazon')
    to_feats, sim_matrix = intra_agg_forward(
        self_feats, mask01, inv_deg, embed_matrix, params)
    to_feats = jax.block_until_ready(to_feats)
    sim_matrix = jax.block_until_ready(sim_matrix)

    # TODO(synk): ContrastiveLoss class is not provided in the source module;
    # the contrastive loss term is omitted (the hot-path aggregation above is exact).
    loss = jnp.float32(0.0)

    # Tight check vs quantization-matched reference (same bf16 operand casts)
    ref_out_q, ref_sim_q = intra_agg_ref_bf16(
        self_feats, mask01, inv_deg, embed_matrix, simTrans, weight)
    np.testing.assert_allclose(np.asarray(to_feats), np.asarray(ref_out_q),
                               rtol=2e-4, atol=2e-4)
    np.testing.assert_allclose(np.asarray(sim_matrix), np.asarray(ref_sim_q),
                               rtol=2e-4, atol=2e-4)

    # Loose check vs pure f32 module semantics (bf16-operand-level tolerance)
    ref_out, ref_sim = intra_agg_ref_f32(
        self_feats, mask01, inv_deg, embed_matrix, simTrans, weight)
    np.testing.assert_allclose(np.asarray(to_feats), np.asarray(ref_out),
                               rtol=5e-2, atol=5e-2)
    np.testing.assert_allclose(np.asarray(sim_matrix), np.asarray(ref_sim),
                               rtol=5e-2, atol=5e-2)

    print("KERNEL_OK")
</pallas_src>

<mosaic_0001>
module attributes {stable_mosaic.version = 11 : i64} {
  func.func @intra_agg_kernel(%arg0: memref<16x32xbf16, #tpu.memory_space<vmem>>, %arg1: memref<16x128xbf16, #tpu.memory_space<vmem>>, %arg2: memref<128x32xbf16, #tpu.memory_space<vmem>>, %arg3: memref<16x1xf32, #tpu.memory_space<vmem>>, %arg4: memref<32x128xbf16, #tpu.memory_space<vmem>>, %arg5: memref<32x128xbf16, #tpu.memory_space<vmem>>, %arg6: memref<16x128xbf16, #tpu.memory_space<vmem>>, %arg7: memref<16x128xf32, #tpu.memory_space<vmem>>) attributes {dimension_semantics = [], scalar_prefetch = 0 : i64, scratch_operands = 0 : i64, tpu.core_type = #tpu.core_type<tc>} {
    %c0 = arith.constant 0 : index
    %c0_0 = arith.constant 0 : index
    %0 = vector.load %arg0[%c0, %c0_0] : memref<16x32xbf16, #tpu.memory_space<vmem>>, vector<16x32xbf16>
    %c0_1 = arith.constant 0 : index
    %c0_2 = arith.constant 0 : index
    %1 = vector.load %arg4[%c0_1, %c0_2] : memref<32x128xbf16, #tpu.memory_space<vmem>>, vector<32x128xbf16>
    %cst = arith.constant dense<0.000000e+00> : vector<16x128xf32>
    %2 = tpu.matmul %0, %1, %cst {dimension_numbers = #tpu.dot_dimension_numbers<[1], [0], [0], [1], [0, 0, 1, 1], [], []>} : vector<16x32xbf16>, vector<32x128xbf16>, vector<16x128xf32> -> vector<16x128xf32>
    %3 = vector.extract_strided_slice %2 {offsets = [0, 0], sizes = [16, 16], strides = [1, 1]} : vector<16x128xf32> to vector<16x16xf32>
    %cst_3 = arith.constant 0.000000e+00 : f32
    %4 = vector.broadcast %cst_3 : f32 to vector<16x16xf32>
    %5 = arith.maximumf %3, %4 : vector<16x16xf32>
    %c0_4 = arith.constant 0 : index
    %c0_5 = arith.constant 0 : index
    %6 = vector.load %arg1[%c0_4, %c0_5] : memref<16x128xbf16, #tpu.memory_space<vmem>>, vector<16x128xbf16>
    %c0_6 = arith.constant 0 : index
    %c0_7 = arith.constant 0 : index
    %7 = vector.load %arg2[%c0_6, %c0_7] : memref<128x32xbf16, #tpu.memory_space<vmem>>, vector<128x32xbf16>
    %cst_8 = arith.constant dense<0.000000e+00> : vector<16x32xf32>
    %8 = tpu.matmul %6, %7, %cst_8 {dimension_numbers = #tpu.dot_dimension_numbers<[1], [0], [0], [1], [0, 0, 1, 1], [], []>} : vector<16x128xbf16>, vector<128x32xbf16>, vector<16x32xf32> -> vector<16x32xf32>
    %c0_9 = arith.constant 0 : index
    %c0_10 = arith.constant 0 : index
    %9 = vector.load %arg3[%c0_9, %c0_10] : memref<16x1xf32, #tpu.memory_space<vmem>>, vector<16x1xf32>
    %10 = vector.broadcast %9 : vector<16x1xf32> to vector<16x32xf32>
    %11 = arith.mulf %8, %10 : vector<16x32xf32>
    %12 = arith.truncf %11 : vector<16x32xf32> to vector<16x32xbf16>
    %c0_11 = arith.constant 0 : index
    %c0_12 = arith.constant 0 : index
    %13 = vector.load %arg5[%c0_11, %c0_12] : memref<32x128xbf16, #tpu.memory_space<vmem>>, vector<32x128xbf16>
    %cst_13 = arith.constant dense<0.000000e+00> : vector<16x128xf32>
    %14 = tpu.matmul %12, %13, %cst_13 {dimension_numbers = #tpu.dot_dimension_numbers<[1], [0], [0], [1], [0, 0, 1, 1], [], []>} : vector<16x32xbf16>, vector<32x128xbf16>, vector<16x128xf32> -> vector<16x128xf32>
    %15 = arith.truncf %5 : vector<16x16xf32> to vector<16x16xbf16>
    %c0_14 = arith.constant 0 : index
    %c0_15 = arith.constant 0 : index
    %16 = vector.load %arg6[%c0_14, %c0_15] : memref<16x128xbf16, #tpu.memory_space<vmem>>, vector<16x128xbf16>
    %cst_16 = arith.constant dense<0.000000e+00> : vector<16x128xf32>
    %17 = tpu.matmul %15, %16, %cst_16 {dimension_numbers = #tpu.dot_dimension_numbers<[1], [0], [0], [1], [0, 0, 1, 1], [], []>} : vector<16x16xbf16>, vector<16x128xbf16>, vector<16x128xf32> -> vector<16x128xf32>
    %18 = arith.addf %14, %17 : vector<16x128xf32>
    %19 = arith.addf %2, %18 : vector<16x128xf32>
    %cst_17 = arith.constant 0.000000e+00 : f32
    %20 = vector.broadcast %cst_17 : f32 to vector<16x128xf32>
    %21 = arith.maximumf %19, %20 : vector<16x128xf32>
    %c0_18 = arith.constant 0 : index
    %c0_19 = arith.constant 0 : index
    %22 = vector.load %arg7[%c0_18, %c0_19] : memref<16x128xf32, #tpu.memory_space<vmem>>, vector<16x128xf32>
    tpu.vector_store %arg7[%c0_18, %c0_19], %21 {strides = array<i32>} : memref<16x128xf32, #tpu.memory_space<vmem>>, vector<16x128xf32>,
    return
  }
}

</mosaic_0001>

<llo_original>
// kernel: _intra_agg_forward_jit.1
$region0: #{_intra_agg_forward_jit.1}
  #allocation0 [shape = 'u32[]', space=smem, size = 0x4, offset = 0x4, fixed_abs, tag = 'smem constant byte address 0x4 - core index']
  #allocation1 [shape = 'u32[144,128]{1,0:T(1,128)}', space=vmem, size = 0x12000, scoped, tag = 'internal scratch']
  %s0 = inlined_call_operand.vmem [shape: bf16[16,32], index: 0, kind: input, shape index: {}]
  %s1 = inlined_call_operand.vmem [shape: bf16[16,128], index: 1, kind: input, shape index: {}]
  %s2 = inlined_call_operand.vmem [shape: bf16[128,32], index: 2, kind: input, shape index: {}]
  %s3 = inlined_call_operand.vmem [shape: f32[16,1], index: 3, kind: input, shape index: {}]
  %s4 = inlined_call_operand.vmem [shape: bf16[32,128], index: 4, kind: input, shape index: {}]
  %s5 = inlined_call_operand.vmem [shape: bf16[32,128], index: 5, kind: input, shape index: {}]
  %s6 = inlined_call_operand.vmem [shape: bf16[16,128], index: 6, kind: input, shape index: {}]
  %s7 = inlined_call_operand.vmem [shape: f32[16,128], index: 7, kind: output, shape index: {}]
  %s8 = sld [smem:[#allocation0]]
  $region38: #{_intra_agg_forward_jit.1} parent=0
    _
  %s10 = ssub.s32 1, %s8
  %s11 = scalar_select 0, %s10, %s8
  // Predicated region
  $region2: #{_intra_agg_forward_jit.1} parent=0 // pred_check
    _
  $region3: #{_intra_agg_forward_jit.1} parent=0 // pred_check_branch
    %13 = sbr.rel (0) target = $region5
  $region4: #{_intra_agg_forward_jit.1} parent=0 // pred_region
    _
  $region5: #{_intra_agg_forward_jit.1} parent=0 // pred_fallthru
    _
  // Predicated region
  $region6: #{_intra_agg_forward_jit.1} parent=0 // pred_check
    _
  $region7: #{_intra_agg_forward_jit.1} parent=0 // pred_check_branch
    %15 = sbr.rel (0) target = $region9
  $region8: #{_intra_agg_forward_jit.1} parent=0 // pred_region
    _
  $region9: #{_intra_agg_forward_jit.1} parent=0 // pred_fallthru
    _
  // Predicated region
  $region10: #{_intra_agg_forward_jit.1} parent=0 // pred_check
    _
  $region11: #{_intra_agg_forward_jit.1} parent=0 // pred_check_branch
    %17 = sbr.rel (0) target = $region13
  $region12: #{_intra_agg_forward_jit.1} parent=0 // pred_region
    _
  $region13: #{_intra_agg_forward_jit.1} parent=0 // pred_fallthru
    _
  // Predicated region
  $region14: #{_intra_agg_forward_jit.1} parent=0 // pred_check
    _
  $region15: #{_intra_agg_forward_jit.1} parent=0 // pred_check_branch
    %19 = sbr.rel (0) target = $region17
  $region16: #{_intra_agg_forward_jit.1} parent=0 // pred_region
    _
  $region17: #{_intra_agg_forward_jit.1} parent=0 // pred_fallthru
    _
  // Predicated region
  $region18: #{_intra_agg_forward_jit.1} parent=0 // pred_check
    _
  $region19: #{_intra_agg_forward_jit.1} parent=0 // pred_check_branch
    %21 = sbr.rel (0) target = $region21
  $region20: #{_intra_agg_forward_jit.1} parent=0 // pred_region
    _
  $region21: #{_intra_agg_forward_jit.1} parent=0 // pred_fallthru
    _
  // Predicated region
  $region22: #{_intra_agg_forward_jit.1} parent=0 // pred_check
    _
  $region23: #{_intra_agg_forward_jit.1} parent=0 // pred_check_branch
    %23 = sbr.rel (0) target = $region25
  $region24: #{_intra_agg_forward_jit.1} parent=0 // pred_region
    _
  $region25: #{_intra_agg_forward_jit.1} parent=0 // pred_fallthru
    _
  // Predicated region
  $region26: #{_intra_agg_forward_jit.1} parent=0 // pred_check
    _
  $region27: #{_intra_agg_forward_jit.1} parent=0 // pred_check_branch
    %25 = sbr.rel (0) target = $region29
  $region28: #{_intra_agg_forward_jit.1} parent=0 // pred_region
    _
  $region29: #{_intra_agg_forward_jit.1} parent=0 // pred_fallthru
    _
  %v27 = vld [vmem:[%s0] sm:$0xf]
  %v28 = vld [vmem:[%s0 + $0x4] sm:$0xf]
  %v29 = vld [vmem:[%s4] sm:$0xf]
  %v30 = vld [vmem:[%s4 + $0x4] sm:$0xf]
  %v31 = vld [vmem:[%s4 + $0x8] sm:$0xf]
  %v32 = vld [vmem:[%s4 + $0xc] sm:$0xf]
  %v35 = vunpack.c.l.b16 %v27
  %v36 = vunpack.c.l.b16 %v28
  %v37 = vpack.c.b16 %v36, %v35
  %v42 = vunpack.c.l.b16 %v29
  %v43 = vunpack.c.l.b16 %v30
  %v44 = vunpack.c.l.b16 %v31
  %v45 = vunpack.c.l.b16 %v32
  %v46 = vpack.c.b16 %v43, %v42
  %v47 = vpack.c.b16 %v45, %v44
  %vm50 = vcmask 261120
  %v52 = vsel %vm50, %v37, 0
  %54 = vmatprep.subr.bf16.mxu0 0
  %55 = vmatpush1.bf16.msra.mxu0 %v46
  %56 = vmatprep.subr.bf16.mxu0 0
  %57 = vmatpush1.bf16.msra.mxu0 %v47
  %58 = vmatprep.subr.bf16.mxu0 0
  %59 = vmatpush1.bf16.msra.mxu0 0
  %60 = vmatprep.subr.bf16.mxu0 0
  %61 = vmatpush1.bf16.msra.mxu0 0
  %62 = vmatprep.subr.bf16.mxu0 0
  %63 = vmatpush1.bf16.msra.mxu0 0
  %64 = vmatprep.subr.bf16.mxu0 0
  %65 = vmatpush1.bf16.msra.mxu0 0
  %66 = vmatprep.subr.bf16.mxu0 0
  %67 = vmatpush1.bf16.msra.mxu0 0
  %68 = vmatprep.subr.bf16.mxu0 0
  %69 = vmatpush1.bf16.msra.mxu0 0
  %70 = vmatprep.subr.bf16.mxu0 0
  %71 = vmatpush1.bf16.msra.mxu0 0
  %72 = vmatprep.subr.bf16.mxu0 0
  %73 = vmatpush1.bf16.msra.mxu0 0
  %74 = vmatprep.subr.bf16.mxu0 0
  %75 = vmatpush1.bf16.msra.mxu0 0
  %76 = vmatprep.subr.bf16.mxu0 0
  %77 = vmatpush1.bf16.msra.mxu0 0
  %78 = vmatprep.subr.bf16.mxu0 0
  %79 = vmatpush1.bf16.msra.mxu0 0
  %80 = vmatprep.subr.bf16.mxu0 0
  %81 = vmatpush1.bf16.msra.mxu0 0
  %82 = vmatprep.subr.bf16.mxu0 0
  %83 = vmatpush1.bf16.msra.mxu0 0
  %84 = vmatprep.subr.bf16.mxu0 0
  %85 = vmatpush1.bf16.msra.mxu0 0
  %86 = vmatprep.mubr.bf16.mxu0 0
  %87 = vmatmul.mubr.bf16.gmra.mrb[0].mxu0 %v52
  %v88 = vpop.f32.mrb[0].mxu0
  %v89 = vadd.f32 0.0, %v88
  %v90 = vpop.f32.mrb[0].mxu0
  %v91 = vpop.f32.mrb[0].mxu0
  %v92 = vadd.f32 0.0, %v91
  %v93 = vpop.f32.mrb[0].mxu0
  %94 = vdwg.mxu0
  %v95 = vmax.f32 %v89, 0.0
  %v96 = vmax.f32 %v92, 0.0
  %v97 = vld [vmem:[%s1] sm:$0xf]
  %v98 = vld [vmem:[%s1 + $0x4] sm:$0xf]
  %v99 = vld [vmem:[%s2] sm:$0xf]
  %v100 = vld [vmem:[%s2 + $0x4] sm:$0xf]
  %v101 = vld [vmem:[%s2 + $0x8] sm:$0xf]
  %v102 = vld [vmem:[%s2 + $0xc] sm:$0xf]
  %v103 = vld [vmem:[%s2 + $0x10] sm:$0xf]
  %v104 = vld [vmem:[%s2 + $0x14] sm:$0xf]
  %v105 = vld [vmem:[%s2 + $0x18] sm:$0xf]
  %v106 = vld [vmem:[%s2 + $0x1c] sm:$0xf]
  %v107 = vld [vmem:[%s2 + $0x20] sm:$0xf]
  %v108 = vld [vmem:[%s2 + $0x24] sm:$0xf]
  %v109 = vld [vmem:[%s2 + $0x28] sm:$0xf]
  %v110 = vld [vmem:[%s2 + $0x2c] sm:$0xf]
  %v111 = vld [vmem:[%s2 + $0x30] sm:$0xf]
  %v112 = vld [vmem:[%s2 + $0x34] sm:$0xf]
  %v113 = vld [vmem:[%s2 + $0x38] sm:$0xf]
  %v114 = vld [vmem:[%s2 + $0x3c] sm:$0xf]
  %v117 = vunpack.c.l.b16 %v97
  %v118 = vunpack.c.l.b16 %v98
  %v119 = vpack.c.b16 %v118, %v117
  %v137 = vunpack.c.l.b16 %v99
  %v138 = vunpack.c.l.b16 %v100
  %v139 = vunpack.c.l.b16 %v101
  %v140 = vunpack.c.l.b16 %v102
  %v141 = vunpack.c.l.b16 %v103
  %v142 = vunpack.c.l.b16 %v104
  %v143 = vunpack.c.l.b16 %v105
  %v144 = vunpack.c.l.b16 %v106
  %v145 = vunpack.c.l.b16 %v107
  %v146 = vunpack.c.l.b16 %v108
  %v147 = vunpack.c.l.b16 %v109
  %v148 = vunpack.c.l.b16 %v110
  %v149 = vunpack.c.l.b16 %v111
  %v150 = vunpack.c.l.b16 %v112
  %v151 = vunpack.c.l.b16 %v113
  %v152 = vunpack.c.l.b16 %v114
  %v153 = vpack.c.b16 %v138, %v137
  %v154 = vpack.c.b16 %v140, %v139
  %v155 = vpack.c.b16 %v142, %v141
  %v156 = vpack.c.b16 %v144, %v143
  %v157 = vpack.c.b16 %v146, %v145
  %v158 = vpack.c.b16 %v148, %v147
  %v159 = vpack.c.b16 %v150, %v149
  %v160 = vpack.c.b16 %v152, %v151
  %169 = vmatprep.subr.bf16.mxu0 0
  %170 = vmatpush1.bf16.msra.mxu0 %v153
  %171 = vmatprep.subr.bf16.mxu0 0
  %172 = vmatpush1.bf16.msra.mxu0 %v154
  %173 = vmatprep.subr.bf16.mxu0 0
  %174 = vmatpush1.bf16.msra.mxu0 %v155
  %175 = vmatprep.subr.bf16.mxu0 0
  %176 = vmatpush1.bf16.msra.mxu0 %v156
  %177 = vmatprep.subr.bf16.mxu0 0
  %178 = vmatpush1.bf16.msra.mxu0 %v157
  %179 = vmatprep.subr.bf16.mxu0 0
  %180 = vmatpush1.bf16.msra.mxu0 %v158
  %181 = vmatprep.subr.bf16.mxu0 0
  %182 = vmatpush1.bf16.msra.mxu0 %v159
  %183 = vmatprep.subr.bf16.mxu0 0
  %184 = vmatpush1.bf16.msra.mxu0 %v160
  %185 = vmatprep.subr.bf16.mxu0 0
  %186 = vmatpush1.bf16.msra.mxu0 0
  %187 = vmatprep.subr.bf16.mxu0 0
  %188 = vmatpush1.bf16.msra.mxu0 0
  %189 = vmatprep.subr.bf16.mxu0 0
  %190 = vmatpush1.bf16.msra.mxu0 0
  %191 = vmatprep.subr.bf16.mxu0 0
  %192 = vmatpush1.bf16.msra.mxu0 0
  %193 = vmatprep.subr.bf16.mxu0 0
  %194 = vmatpush1.bf16.msra.mxu0 0
  %195 = vmatprep.subr.bf16.mxu0 0
  %196 = vmatpush1.bf16.msra.mxu0 0
  %197 = vmatprep.subr.bf16.mxu0 0
  %198 = vmatpush1.bf16.msra.mxu0 0
  %199 = vmatprep.subr.bf16.mxu0 0
  %200 = vmatpush1.bf16.msra.mxu0 0
  %201 = vmatprep.mubr.bf16.mxu0 0
  %202 = vmatmul.mubr.bf16.gmra.mrb[0].mxu0 %v119
  %v203 = vpop.f32.mrb[0].mxu0
  %v204 = vadd.f32 0.0, %v203
  %v205 = vpop.f32.mrb[0].mxu0
  %v206 = vpop.f32.mrb[0].mxu0
  %v207 = vadd.f32 0.0, %v206
  %v208 = vpop.f32.mrb[0].mxu0
  %209 = vdwg.mxu0
  %v210 = vld [vmem:[%s3] sm:$0xff]
  %v211 = vld [vmem:[%s3 + $0x8] sm:$0xff]
  %213 = vset.pattern.permute.xlu0 0
  %214 = vperm.xlu0 %213, %v210
  %v215 = vpop.permute.xlu0 %214
  %218 = vset.pattern.permute.xlu0 0
  %219 = vperm.xlu0 %218, %v211
  %v220 = vpop.permute.xlu0 %219
  %v222 = vmul.f32 %v204, %v215
  %v223 = vmul.f32 %v207, %v220
  %v224 = vpack.c.bf16 %v223, %v222
  %v225 = vld [vmem:[%s5] sm:$0xf]
  %v226 = vld [vmem:[%s5 + $0x4] sm:$0xf]
  %v227 = vld [vmem:[%s5 + $0x8] sm:$0xf]
  %v228 = vld [vmem:[%s5 + $0xc] sm:$0xf]
  %v229 = vpack.c.bf16 %v96, %v95
  %v230 = vld [vmem:[%s6] sm:$0xf]
  %v231 = vld [vmem:[%s6 + $0x4] sm:$0xf]
  %v234 = vunpack.c.l.b16 %v230
  %v235 = vunpack.c.l.b16 %v231
  %v236 = vpack.c.b16 %v235, %v234
  %vm238 = vcmask 130048
  %v240 = vsel %vm238, %v229, 0
  %242 = vmatprep.subr.bf16.mxu0 0
  %243 = vmatpush1.bf16.msra.mxu0 %v236
  %244 = vmatprep.subr.bf16.mxu0 0
  %245 = vmatpush1.bf16.msra.mxu0 0
  %246 = vmatprep.subr.bf16.mxu0 0
  %247 = vmatpush1.bf16.msra.mxu0 0
  %248 = vmatprep.subr.bf16.mxu0 0
  %249 = vmatpush1.bf16.msra.mxu0 0
  %250 = vmatprep.subr.bf16.mxu0 0
  %251 = vmatpush1.bf16.msra.mxu0 0
  %252 = vmatprep.subr.bf16.mxu0 0
  %253 = vmatpush1.bf16.msra.mxu0 0
  %254 = vmatprep.subr.bf16.mxu0 0
  %255 = vmatpush1.bf16.msra.mxu0 0
  %256 = vmatprep.subr.bf16.mxu0 0
  %257 = vmatpush1.bf16.msra.mxu0 0
  %258 = vmatprep.subr.bf16.mxu0 0
  %259 = vmatpush1.bf16.msra.mxu0 0
  %260 = vmatprep.subr.bf16.mxu0 0
  %261 = vmatpush1.bf16.msra.mxu0 0
  %262 = vmatprep.subr.bf16.mxu0 0
  %263 = vmatpush1.bf16.msra.mxu0 0
  %264 = vmatprep.subr.bf16.mxu0 0
  %265 = vmatpush1.bf16.msra.mxu0 0
  %266 = vmatprep.subr.bf16.mxu0 0
  %267 = vmatpush1.bf16.msra.mxu0 0
  %268 = vmatprep.subr.bf16.mxu0 0
  %269 = vmatpush1.bf16.msra.mxu0 0
  %270 = vmatprep.subr.bf16.mxu0 0
  %271 = vmatpush1.bf16.msra.mxu0 0
  %272 = vmatprep.subr.bf16.mxu0 0
  %273 = vmatpush1.bf16.msra.mxu0 0
  %274 = vmatprep.mubr.bf16.mxu0 0
  %275 = vmatmul.mubr.bf16.gmra.mrb[0].mxu0 %v240
  %v276 = vpop.f32.mrb[0].mxu0
  %v277 = vadd.f32 0.0, %v276
  %v278 = vpop.f32.mrb[0].mxu0
  %v279 = vpop.f32.mrb[0].mxu0
  %v280 = vadd.f32 0.0, %v279
  %v281 = vpop.f32.mrb[0].mxu0
  %282 = vdwg.mxu0
  %v287 = vunpack.c.l.b16 %v225
  %v288 = vunpack.c.l.b16 %v226
  %v289 = vunpack.c.l.b16 %v227
  %v290 = vunpack.c.l.b16 %v228
  %v291 = vpack.c.b16 %v288, %v287
  %v292 = vpack.c.b16 %v290, %v289
  %v296 = vsel %vm50, %v224, 0
  %298 = vmatprep.subr.bf16.mxu0 0
  %299 = vmatpush1.bf16.msra.mxu0 %v291
  %300 = vmatprep.subr.bf16.mxu0 0
  %301 = vmatpush1.bf16.msra.mxu0 %v292
  %302 = vmatprep.subr.bf16.mxu0 0
  %303 = vmatpush1.bf16.msra.mxu0 0
  %304 = vmatprep.subr.bf16.mxu0 0
  %305 = vmatpush1.bf16.msra.mxu0 0
  %306 = vmatprep.subr.bf16.mxu0 0
  %307 = vmatpush1.bf16.msra.mxu0 0
  %308 = vmatprep.subr.bf16.mxu0 0
  %309 = vmatpush1.bf16.msra.mxu0 0
  %310 = vmatprep.subr.bf16.mxu0 0
  %311 = vmatpush1.bf16.msra.mxu0 0
  %312 = vmatprep.subr.bf16.mxu0 0
  %313 = vmatpush1.bf16.msra.mxu0 0
  %314 = vmatprep.subr.bf16.mxu0 0
  %315 = vmatpush1.bf16.msra.mxu0 0
  %316 = vmatprep.subr.bf16.mxu0 0
  %317 = vmatpush1.bf16.msra.mxu0 0
  %318 = vmatprep.subr.bf16.mxu0 0
  %319 = vmatpush1.bf16.msra.mxu0 0
  %320 = vmatprep.subr.bf16.mxu0 0
  %321 = vmatpush1.bf16.msra.mxu0 0
  %322 = vmatprep.subr.bf16.mxu0 0
  %323 = vmatpush1.bf16.msra.mxu0 0
  %324 = vmatprep.subr.bf16.mxu0 0
  %325 = vmatpush1.bf16.msra.mxu0 0
  %326 = vmatprep.subr.bf16.mxu0 0
  %327 = vmatpush1.bf16.msra.mxu0 0
  %328 = vmatprep.subr.bf16.mxu0 0
  %329 = vmatpush1.bf16.msra.mxu0 0
  %330 = vmatprep.mubr.bf16.mxu0 0
  %331 = vmatmul.mubr.bf16.gmra.mrb[0].mxu0 %v296
  %v332 = vpop.f32.mrb[0].mxu0
  %v333 = vadd.f32 %v277, %v332
  %v334 = vpop.f32.mrb[0].mxu0
  %v335 = vpop.f32.mrb[0].mxu0
  %v336 = vadd.f32 %v280, %v335
  %v337 = vpop.f32.mrb[0].mxu0
  %338 = vdwg.mxu0
  %v339 = vadd.f32 %v89, %v333
  %v340 = vadd.f32 %v92, %v336
  %v341 = vmax.f32 %v339, 0.0
  %v342 = vmax.f32 %v340, 0.0
  %343 = vst [vmem:[%s7] sm:$0xff] %v341
  %344 = vst [vmem:[%s7 + $0x8] sm:$0xff] %v342
  // Predicated region
  $region30: #{_intra_agg_forward_jit.1} parent=0 // pred_check
    _
  $region31: #{_intra_agg_forward_jit.1} parent=0 // pred_check_branch
    %346 = sbr.rel (0) target = $region33
  $region32: #{_intra_agg_forward_jit.1} parent=0 // pred_region
    _
  $region33: #{_intra_agg_forward_jit.1} parent=0 // pred_fallthru
    _
  // Predicated region
  $region34: #{_intra_agg_forward_jit.1} parent=0 // pred_check
    _
  $region35: #{_intra_agg_forward_jit.1} parent=0 // pred_check_branch
    %348 = sbr.rel (0) target = $region37
  $region36: #{_intra_agg_forward_jit.1} parent=0 // pred_region
    _
  $region37: #{_intra_agg_forward_jit.1} parent=0 // pred_fallthru
    _

</llo_original>
